<compile_context>
chip_gen: v5e
topology: v5e:2x2
jax: 0.10.0
libtpu: 0.0.40
codegen_flags: <defaults>
</compile_context>

<pallas_src>
import functools

import jax
import jax.numpy as jnp
from jax.experimental import pallas as pl
from jax.experimental.pallas import tpu as pltpu


def _round_up(x, m):
    return (x + m - 1) // m * m


def _patchify(x, patch_size):
    """NCHW -> [B, N, C*P*P] with (C, P, P)-ordered patch pixels (Conv2d layout)."""
    B, C, H, W = x.shape
    P = patch_size
    nh, nw = H // P, W // P
    patches = x.reshape(B, C, nh, P, nw, P)
    patches = patches.transpose(0, 2, 4, 1, 3, 5).reshape(B, nh * nw, C * P * P)
    return patches, nh * nw


def encoder_kernel(patches_ref, w_emb_ref, b_emb_ref, gamma_ref, beta_ref,
                   w_head_ref, b_head_ref, out_ref, *, h_real, n_tokens):
    # patches: [TB*N, CPP] bf16      w_emb: [CPP, Hp] bf16
    # b_emb/gamma/beta: [1, Hp] f32  w_head: [Hp, 128] bf16   b_head: [1, 128] f32
    # out: [TB, 128] f32
    m = patches_ref.shape[0]
    hp = w_emb_ref.shape[1]
    tb = m // n_tokens

    # --- patch embedding: one tall MXU matmul (M = TB*N), f32 accumulate ---
    tokens = jnp.dot(patches_ref[...], w_emb_ref[...],
                     preferred_element_type=jnp.float32)          # [TB*N, Hp]
    tokens = tokens + b_emb_ref[...]

    # --- backbone final LayerNorm over the REAL hidden width ---
    # Pad columns of `tokens` are exactly zero (zero-padded weight columns + bias),
    # so lane sums over Hp equal sums over h_real; variance via E[x^2] - mean^2
    # keeps the statistics correct despite the padding.
    inv_h = 1.0 / float(h_real)
    mean = jnp.sum(tokens, axis=-1, keepdims=True) * inv_h
    ex2 = jnp.sum(tokens * tokens, axis=-1, keepdims=True) * inv_h
    var = ex2 - mean * mean
    tokens = (tokens - mean) * jax.lax.rsqrt(var + 1e-5)
    tokens = tokens * gamma_ref[...] + beta_ref[...]               # pad cols stay 0

    # --- Swin pooler: mean over tokens (sublane reduction; minor dim stays 128) ---
    pooled = jnp.sum(tokens.reshape(tb, n_tokens, hp), axis=1) * (1.0 / float(n_tokens))

    # --- head: Linear(hidden, 128) on the MXU (bf16 in, f32 accumulate) ---
    feat = jnp.dot(pooled.astype(jnp.bfloat16), w_head_ref[...],
                   preferred_element_type=jnp.float32) + b_head_ref[...]

    # --- F.normalize(p=2, dim=1): x / max(||x||, 1e-12) == x * rsqrt(max(ss, 1e-24)) ---
    sumsq = jnp.sum(feat * feat, axis=-1, keepdims=True)
    out_ref[...] = (feat * jax.lax.rsqrt(jnp.maximum(sumsq, 1e-24))).astype(out_ref.dtype)


def _pick_batch_tile(b, n, cpp, hp, vmem_budget_bytes=8 << 20):
    # Per batch row: double-buffered bf16 patch stream + f32 token intermediates.
    # tb is a multiple of 8 so the (tb, 128) f32 output block satisfies (8, 128).
    per_row = 2 * (n * cpp * 2) + 3 * (n * hp * 4)
    tb = (vmem_budget_bytes // max(per_row, 1)) // 8 * 8
    tb = max(8, min(int(tb), 256))
    return min(tb, _round_up(b, 8))


def image_encoder_forward(x, params, hidden, patch_size=4, tb=None):
    """x: NCHW float32 images. Returns [B, 128] L2-normalized float32 embeddings."""
    B = x.shape[0]
    patches, n = _patchify(x, patch_size)
    cpp = patches.shape[-1]

    cpp_w, hp = params["w_emb"].shape
    out_dim = params["w_head"].shape[1]
    assert cpp_w == cpp and hp >= hidden and hp % 128 == 0

    if tb is None:
        tb = _pick_batch_tile(B, n, cpp, hp)
    assert tb % 8 == 0

    b_pad = _round_up(B, tb)
    if b_pad > B:
        patches = jnp.pad(patches, ((0, b_pad - B), (0, 0), (0, 0)))
    # Row-major [B_pad*N, CPP] slab: the kernel's tall matmul needs no in-kernel reshape.
    patches = patches.reshape(b_pad * n, cpp).astype(jnp.bfloat16)

    kernel = functools.partial(encoder_kernel, h_real=hidden, n_tokens=n)
    out = pl.pallas_call(
        kernel,
        out_shape=jax.ShapeDtypeStruct((b_pad, out_dim), jnp.float32),
        grid=(b_pad // tb,),
        in_specs=[
            pl.BlockSpec((tb * n, cpp), lambda i: (i, 0)),   # streamed patch rows
            pl.BlockSpec((cpp, hp), lambda i: (0, 0)),       # resident weights
            pl.BlockSpec((1, hp), lambda i: (0, 0)),
            pl.BlockSpec((1, hp), lambda i: (0, 0)),
            pl.BlockSpec((1, hp), lambda i: (0, 0)),
            pl.BlockSpec((hp, out_dim), lambda i: (0, 0)),
            pl.BlockSpec((1, out_dim), lambda i: (0, 0)),
        ],
        out_specs=pl.BlockSpec((tb, out_dim), lambda i: (i, 0)),
        compiler_params=pltpu.CompilerParams(
            dimension_semantics=("parallel",)),    # v7x: 2 TCs split the batch grid
    )(patches, params["w_emb"], params["b_emb"], params["gamma"],
      params["beta"], params["w_head"], params["b_head"])
    return out[:B]


def reference_forward(x, params, hidden, patch_size=4):
    """Pure-JAX reference matching the kernel's numerics (bf16 inputs/weights)."""
    patches, _ = _patchify(x, patch_size)
    patches = patches.astype(jnp.bfloat16).astype(jnp.float32)
    w_emb = params["w_emb"].astype(jnp.float32)[:, :hidden]
    b_emb = params["b_emb"][:, :hidden]
    gamma = params["gamma"][:, :hidden]
    beta = params["beta"][:, :hidden]
    w_head = params["w_head"].astype(jnp.float32)[:hidden, :]
    b_head = params["b_head"]

    tokens = jnp.einsum("bnc,ch->bnh", patches, w_emb) + b_emb
    mean = jnp.mean(tokens, axis=-1, keepdims=True)
    var = jnp.mean((tokens - mean) ** 2, axis=-1, keepdims=True)
    tokens = (tokens - mean) * jax.lax.rsqrt(var + 1e-5) * gamma + beta
    pooled = jnp.mean(tokens, axis=1).astype(jnp.bfloat16).astype(jnp.float32)
    feat = pooled @ w_head + b_head
    norm = jnp.maximum(jnp.sqrt(jnp.sum(feat * feat, axis=1, keepdims=True)), 1e-12)
    return feat / norm


def init_params(key, in_channels=3, patch_size=4, hidden=32, out_dim=128):
    """Synthetic parameters mirroring the PyTorch module's shapes.  Hidden width is
    zero-padded to a lane-dense multiple of 128 and weights are pre-transposed for
    row-major matmuls; the patch contraction dim is NOT padded (streamed raw)."""
    k1, k2, k3, k4 = jax.random.split(key, 4)
    cpp = in_channels * patch_size * patch_size
    hp = _round_up(hidden, 128)

    # Conv2d patch-embed weight [hidden, C, P, P] -> flattened & transposed [Cpp, hidden]
    w_conv = jax.random.normal(k1, (hidden, in_channels, patch_size, patch_size),
                               jnp.float32) * 0.05
    w_emb = jnp.zeros((cpp, hp), jnp.float32).at[:, :hidden].set(
        w_conv.reshape(hidden, cpp).T)

    b_emb = jnp.zeros((1, hp), jnp.float32).at[:, :hidden].set(
        jax.random.normal(k2, (1, hidden), jnp.float32) * 0.01)

    gamma = jnp.zeros((1, hp), jnp.float32).at[:, :hidden].set(1.0)
    beta = jnp.zeros((1, hp), jnp.float32)

    # nn.Linear(hidden, 128): weight [128, hidden] -> transposed [hidden, 128], pad rows
    w_lin = jax.random.normal(k3, (out_dim, hidden), jnp.float32) * 0.05
    w_head = jnp.zeros((hp, out_dim), jnp.float32).at[:hidden, :].set(w_lin.T)

    b_head = jax.random.normal(k4, (1, out_dim), jnp.float32) * 0.01

    return {
        "w_emb": w_emb.astype(jnp.bfloat16),
        "b_emb": b_emb,
        "gamma": gamma,
        "beta": beta,
        "w_head": w_head.astype(jnp.bfloat16),
        "b_head": b_head,
    }


if __name__ == "__main__":
    key = jax.random.PRNGKey(0)
    kx, kp = jax.random.split(key)

    B, C, H, W = 16, 3, 16, 16        # small NCHW image batch
    hidden, out_dim, patch = 32, 128, 4
    x = jax.random.normal(kx, (B, C, H, W), jnp.float32)
    params = init_params(kp, in_channels=C, patch_size=patch,
                         hidden=hidden, out_dim=out_dim)

    # tb=8 -> grid of 2 pipelined, megacore-parallel batch tiles
    emb = image_encoder_forward(x, params, hidden=hidden, patch_size=patch, tb=8)
    emb = jax.block_until_ready(emb)

    assert emb.shape == (B, out_dim)
    assert bool(jnp.all(jnp.isfinite(emb)))
    # embeddings must be unit-norm (F.normalize semantics)
    norms = jnp.sqrt(jnp.sum(emb * emb, axis=1))
    assert bool(jnp.all(jnp.abs(norms - 1.0) < 1e-3))
    # match the pure-JAX reference of the same math
    ref = reference_forward(x, params, hidden=hidden, patch_size=patch)
    assert bool(jnp.max(jnp.abs(emb - ref)) < 2e-2)
    print("KERNEL_OK")
</pallas_src>

<mosaic_0001>
module attributes {stable_mosaic.version = 11 : i64} {
  func.func @encoder_kernel(%arg0: i32, %arg1: memref<128x48xbf16, #tpu.memory_space<vmem>>, %arg2: memref<48x128xbf16, #tpu.memory_space<vmem>>, %arg3: memref<1x128xf32, #tpu.memory_space<vmem>>, %arg4: memref<1x128xf32, #tpu.memory_space<vmem>>, %arg5: memref<1x128xf32, #tpu.memory_space<vmem>>, %arg6: memref<128x128xbf16, #tpu.memory_space<vmem>>, %arg7: memref<1x128xf32, #tpu.memory_space<vmem>>, %arg8: memref<8x128xf32, #tpu.memory_space<vmem>>) attributes {dimension_semantics = [#tpu.dimension_semantics<parallel>], iteration_bounds = array<i64: 2>, scalar_prefetch = 0 : i64, scratch_operands = 0 : i64, tpu.core_type = #tpu.core_type<tc>, window_params = [{transform_indices = @transform_0, window_bounds = array<i64: 128, 48>}, {pipeline_mode = #tpu.pipeline_mode<synchronous>, transform_indices = @transform_1, window_bounds = array<i64: 48, 128>}, {pipeline_mode = #tpu.pipeline_mode<synchronous>, transform_indices = @transform_2, window_bounds = array<i64: 1, 128>}, {pipeline_mode = #tpu.pipeline_mode<synchronous>, transform_indices = @transform_3, window_bounds = array<i64: 1, 128>}, {pipeline_mode = #tpu.pipeline_mode<synchronous>, transform_indices = @transform_4, window_bounds = array<i64: 1, 128>}, {pipeline_mode = #tpu.pipeline_mode<synchronous>, transform_indices = @transform_5, window_bounds = array<i64: 128, 128>}, {pipeline_mode = #tpu.pipeline_mode<synchronous>, transform_indices = @transform_6, window_bounds = array<i64: 1, 128>}, {transform_indices = @transform_7, window_bounds = array<i64: 8, 128>}]} {
    %c0 = arith.constant 0 : index
    %c0_0 = arith.constant 0 : index
    %0 = vector.load %arg1[%c0, %c0_0] : memref<128x48xbf16, #tpu.memory_space<vmem>>, vector<128x48xbf16>
    %c0_1 = arith.constant 0 : index
    %c0_2 = arith.constant 0 : index
    %1 = vector.load %arg2[%c0_1, %c0_2] : memref<48x128xbf16, #tpu.memory_space<vmem>>, vector<48x128xbf16>
    %cst = arith.constant dense<0.000000e+00> : vector<128x128xf32>
    %2 = tpu.matmul %0, %1, %cst {dimension_numbers = #tpu.dot_dimension_numbers<[1], [0], [0], [1], [0, 0, 1, 1], [], []>} : vector<128x48xbf16>, vector<48x128xbf16>, vector<128x128xf32> -> vector<128x128xf32>
    %c0_3 = arith.constant 0 : index
    %c0_4 = arith.constant 0 : index
    %3 = vector.load %arg3[%c0_3, %c0_4] : memref<1x128xf32, #tpu.memory_space<vmem>>, vector<1x128xf32>
    %4 = vector.broadcast %3 : vector<1x128xf32> to vector<128x128xf32>
    %5 = arith.addf %2, %4 : vector<128x128xf32>
    %cst_5 = arith.constant dense<0.000000e+00> : vector<128xf32>
    %6 = vector.multi_reduction <add>, %5, %cst_5 [1] : vector<128x128xf32> to vector<128xf32>
    %7 = vector.shape_cast %6 : vector<128xf32> to vector<128x1xf32>
    %cst_6 = arith.constant 3.125000e-02 : f32
    %8 = vector.broadcast %cst_6 : f32 to vector<128x1xf32>
    %9 = arith.mulf %7, %8 : vector<128x1xf32>
    %10 = arith.mulf %5, %5 : vector<128x128xf32>
    %cst_7 = arith.constant dense<0.000000e+00> : vector<128xf32>
    %11 = vector.multi_reduction <add>, %10, %cst_7 [1] : vector<128x128xf32> to vector<128xf32>
    %12 = vector.shape_cast %11 : vector<128xf32> to vector<128x1xf32>
    %cst_8 = arith.constant 3.125000e-02 : f32
    %13 = vector.broadcast %cst_8 : f32 to vector<128x1xf32>
    %14 = arith.mulf %12, %13 : vector<128x1xf32>
    %15 = arith.mulf %9, %9 : vector<128x1xf32>
    %16 = arith.subf %14, %15 : vector<128x1xf32>
    %17 = vector.broadcast %9 : vector<128x1xf32> to vector<128x128xf32>
    %18 = arith.subf %5, %17 : vector<128x128xf32>
    %cst_9 = arith.constant 9.99999974E-6 : f32
    %19 = vector.broadcast %cst_9 : f32 to vector<128x1xf32>
    %20 = arith.addf %16, %19 : vector<128x1xf32>
    %21 = math.rsqrt %20 : vector<128x1xf32>
    %22 = vector.broadcast %21 : vector<128x1xf32> to vector<128x128xf32>
    %23 = arith.mulf %18, %22 : vector<128x128xf32>
    %c0_10 = arith.constant 0 : index
    %c0_11 = arith.constant 0 : index
    %24 = vector.load %arg4[%c0_10, %c0_11] : memref<1x128xf32, #tpu.memory_space<vmem>>, vector<1x128xf32>
    %25 = vector.broadcast %24 : vector<1x128xf32> to vector<128x128xf32>
    %26 = arith.mulf %23, %25 : vector<128x128xf32>
    %c0_12 = arith.constant 0 : index
    %c0_13 = arith.constant 0 : index
    %27 = vector.load %arg5[%c0_12, %c0_13] : memref<1x128xf32, #tpu.memory_space<vmem>>, vector<1x128xf32>
    %28 = vector.broadcast %27 : vector<1x128xf32> to vector<128x128xf32>
    %29 = arith.addf %26, %28 : vector<128x128xf32>
    %30 = vector.shape_cast %29 : vector<128x128xf32> to vector<8x16x128xf32>
    %cst_14 = arith.constant dense<0.000000e+00> : vector<8x128xf32>
    %31 = vector.multi_reduction <add>, %30, %cst_14 [1] : vector<8x16x128xf32> to vector<8x128xf32>
    %cst_15 = arith.constant 6.250000e-02 : f32
    %32 = vector.broadcast %cst_15 : f32 to vector<8x128xf32>
    %33 = arith.mulf %31, %32 : vector<8x128xf32>
    %34 = arith.truncf %33 : vector<8x128xf32> to vector<8x128xbf16>
    %c0_16 = arith.constant 0 : index
    %c0_17 = arith.constant 0 : index
    %35 = vector.load %arg6[%c0_16, %c0_17] : memref<128x128xbf16, #tpu.memory_space<vmem>>, vector<128x128xbf16>
    %cst_18 = arith.constant dense<0.000000e+00> : vector<8x128xf32>
    %36 = tpu.matmul %34, %35, %cst_18 {dimension_numbers = #tpu.dot_dimension_numbers<[1], [0], [0], [1], [0, 0, 1, 1], [], []>} : vector<8x128xbf16>, vector<128x128xbf16>, vector<8x128xf32> -> vector<8x128xf32>
    %c0_19 = arith.constant 0 : index
    %c0_20 = arith.constant 0 : index
    %37 = vector.load %arg7[%c0_19, %c0_20] : memref<1x128xf32, #tpu.memory_space<vmem>>, vector<1x128xf32>
    %38 = vector.broadcast %37 : vector<1x128xf32> to vector<8x128xf32>
    %39 = arith.addf %36, %38 : vector<8x128xf32>
    %40 = arith.mulf %39, %39 : vector<8x128xf32>
    %cst_21 = arith.constant dense<0.000000e+00> : vector<8xf32>
    %41 = vector.multi_reduction <add>, %40, %cst_21 [1] : vector<8x128xf32> to vector<8xf32>
    %42 = vector.shape_cast %41 : vector<8xf32> to vector<8x1xf32>
    %cst_22 = arith.constant 1.000000e-24 : f32
    %43 = vector.broadcast %cst_22 : f32 to vector<8x1xf32>
    %44 = arith.maximumf %42, %43 : vector<8x1xf32>
    %45 = math.rsqrt %44 : vector<8x1xf32>
    %46 = vector.broadcast %45 : vector<8x1xf32> to vector<8x128xf32>
    %47 = arith.mulf %39, %46 : vector<8x128xf32>
    %c0_23 = arith.constant 0 : index
    %c0_24 = arith.constant 0 : index
    %48 = vector.load %arg8[%c0_23, %c0_24] : memref<8x128xf32, #tpu.memory_space<vmem>>, vector<8x128xf32>
    tpu.vector_store %arg8[%c0_23, %c0_24], %47 {strides = array<i32>} : memref<8x128xf32, #tpu.memory_space<vmem>>, vector<8x128xf32>,
    return
  }
  func.func @transform_0(%arg0: i32) -> (i32, i32) {
    %c0_i32 = arith.constant 0 : i32
    %c0_i32_0 = arith.constant 0 : i32
    return %arg0, %c0_i32 : i32, i32
  }
  func.func @transform_1(%arg0: i32) -> (i32, i32) {
    %c0_i32 = arith.constant 0 : i32
    %c0_i32_0 = arith.constant 0 : i32
    %c0_i32_1 = arith.constant 0 : i32
    return %c0_i32, %c0_i32_0 : i32, i32
  }
  func.func @transform_2(%arg0: i32) -> (i32, i32) {
    %c0_i32 = arith.constant 0 : i32
    %c0_i32_0 = arith.constant 0 : i32
    %c0_i32_1 = arith.constant 0 : i32
    return %c0_i32, %c0_i32_0 : i32, i32
  }
  func.func @transform_3(%arg0: i32) -> (i32, i32) {
    %c0_i32 = arith.constant 0 : i32
    %c0_i32_0 = arith.constant 0 : i32
    %c0_i32_1 = arith.constant 0 : i32
    return %c0_i32, %c0_i32_0 : i32, i32
  }
  func.func @transform_4(%arg0: i32) -> (i32, i32) {
    %c0_i32 = arith.constant 0 : i32
    %c0_i32_0 = arith.constant 0 : i32
    %c0_i32_1 = arith.constant 0 : i32
    return %c0_i32, %c0_i32_0 : i32, i32
  }
  func.func @transform_5(%arg0: i32) -> (i32, i32) {
    %c0_i32 = arith.constant 0 : i32
    %c0_i32_0 = arith.constant 0 : i32
    %c0_i32_1 = arith.constant 0 : i32
    return %c0_i32, %c0_i32_0 : i32, i32
  }
  func.func @transform_6(%arg0: i32) -> (i32, i32) {
    %c0_i32 = arith.constant 0 : i32
    %c0_i32_0 = arith.constant 0 : i32
    %c0_i32_1 = arith.constant 0 : i32
    return %c0_i32, %c0_i32_0 : i32, i32
  }
  func.func @transform_7(%arg0: i32) -> (i32, i32) {
    %c0_i32 = arith.constant 0 : i32
    %c0_i32_0 = arith.constant 0 : i32
    return %arg0, %c0_i32 : i32, i32
  }
}

</mosaic_0001>

<llo_original>
// kernel: tpu_custom_call.1
$region0: #{tpu_custom_call.1}
  #allocation0 [shape = 'u32[]', space=smem, size = 0x4, offset = 0x4, fixed_abs, tag = 'smem constant byte address 0x4 - core index']
  #allocation1 [shape = 'u32[72,128]{1,0:T(1,128)}', space=vmem, size = 0x9000, scoped, tag = 'internal scratch']
  %s0 = inlined_call_operand.vmem [shape: bf16[256,48], index: 0, kind: input, shape index: {}]
  %s1 = inlined_call_operand.vmem [shape: bf16[48,128], index: 1, kind: input, shape index: {}]
  %s2 = inlined_call_operand.vmem [shape: f32[1,128], index: 2, kind: input, shape index: {}]
  %s3 = inlined_call_operand.vmem [shape: f32[1,128], index: 3, kind: input, shape index: {}]
  %s4 = inlined_call_operand.vmem [shape: f32[1,128], index: 4, kind: input, shape index: {}]
  %s5 = inlined_call_operand.vmem [shape: bf16[128,128], index: 5, kind: input, shape index: {}]
  %s6 = inlined_call_operand.vmem [shape: f32[1,128], index: 6, kind: input, shape index: {}]
  %s7 = inlined_call_operand.hbm [shape: f32[16,128], index: 7, kind: output, shape index: {}]
  %s8 = sld [smem:[#allocation0]]
  $region61: #{tpu_custom_call.1} parent=0
    _
  %s10 = ssub.s32 1, %s8
  %s11 = scalar_select 0, %s10, %s8
  $region1: #{tpu_custom_call.1} parent=0
    #allocation2 [shape = 'u8[8192]{0}', space=vmem, size = 0x2000, scoped, tag = 'output window, operand 0']
    #allocation3 [shape = 's32[2]{0}', space=sflag, size = 0x8, scoped, tag = 'scoped memory for tpu_custom_call.1']
    %12 = vsyncpa [#allocation3], 0
    %s13 = scalar_lea.sflag [#allocation3], 1
    %14 = vsyncpa %s13, 0
    loop: start=0, step=1, limit=4
    $region2: #{tpu_custom_call.1} parent=1 // loop_pre_header
      _
    $region3: #{tpu_custom_call.1} parent=1 // loop_header
      %s16 = sphi 0, %s20
      %p17 = scmp.ge.s32.totalorder %s16, 4
      %s26 = sphi 0, %s28
      %s29 = sphi 0, %s26
      %s30 = sphi 0, %s29
      %s46 = sphi 0, %s30
      %s50 = sphi 0, %s50
      %s52 = sphi 0, %s50
      %s53 = sphi 0, %s52
      %s67 = sphi 0, %s53
      %s71 = sphi 0, %s71
      %s73 = sphi 0, %s71
      %s74 = sphi 0, %s73
      %s88 = sphi 0, %s74
      %s92 = sphi 0, %s92
      %s94 = sphi 0, %s92
      %s95 = sphi 0, %s94
      %s109 = sphi 0, %s95
      %s113 = sphi 0, %s113
      %s115 = sphi 0, %s113
      %s116 = sphi 0, %s115
      %s130 = sphi 0, %s116
      %s134 = sphi 0, %s134
      %s136 = sphi 0, %s134
      %s137 = sphi 0, %s136
      %s151 = sphi 0, %s137
      %s155 = sphi 0, %s155
      %s157 = sphi 0, %s155
      %s158 = sphi 0, %s157
      %s172 = sphi 0, %s158
      %s178 = sphi 0, %s180
      %s181 = sphi 0, %s178
      %s182 = sphi 0, %s181
      %s198 = sphi 0, %s182
    $region4: #{tpu_custom_call.1} parent=1 // loop_header_branch
      %19 = sbr.rel (%p17) target = $region8
    $region5: #{tpu_custom_call.1} parent=1 // loop_body
      %s21 = ssub.s32 %s16, 1
      %s22 = ssub.s32 %s16, 2
      %s23 = sadd.s32 %s16, 1
      %s24 = ssub.s32 %s16, %s23
      %p25 = scmp.eq.s32.totalorder %s24, 0
      %s27 = sadd.s32 %s26, 1
      %s28 = scalar_select %p25, %s26, %s27
      %p31 = pneg %p25
      %p32 = scmp.eq.s32.totalorder %s16, 1
      %p33 = por %p31, %p32
      %p34 = scmp.ne.s32.totalorder %s26, %s29
      %p35 = scmp.eq.s32.totalorder %s16, 0
      %p36 = por %p34, %p35
      %p37 = scmp.ne.s32.totalorder %s26, %s29
      %p38 = scmp.eq.s32.totalorder %s21, 1
      %p39 = por %p37, %p38
      %p40 = scmp.ne.s32.totalorder %s29, %s30
      %p41 = scmp.eq.s32.totalorder %s21, 0
      %p42 = por %p40, %p41
      %p43 = scmp.ne.s32.totalorder %s29, %s30
      %p44 = scmp.eq.s32.totalorder %s22, 1
      %p45 = por %p43, %p44
      %p47 = scmp.ne.s32.totalorder %s30, %s46
      %p48 = scmp.eq.s32.totalorder %s22, 0
      %p49 = por %p47, %p48
      %s51 = sadd.s32 %s50, 1
      %p54 = scmp.eq.s32.totalorder %s16, 1
      %p55 = scmp.ne.s32.totalorder %s50, %s52
      %p56 = scmp.eq.s32.totalorder %s16, 0
      %p57 = por %p55, %p56
      %p58 = scmp.ne.s32.totalorder %s50, %s52
      %p59 = scmp.eq.s32.totalorder %s21, 1
      %p60 = por %p58, %p59
      %p61 = scmp.ne.s32.totalorder %s52, %s53
      %p62 = scmp.eq.s32.totalorder %s21, 0
      %p63 = por %p61, %p62
      %p64 = scmp.ne.s32.totalorder %s52, %s53
      %p65 = scmp.eq.s32.totalorder %s22, 1
      %p66 = por %p64, %p65
      %p68 = scmp.ne.s32.totalorder %s53, %s67
      %p69 = scmp.eq.s32.totalorder %s22, 0
      %p70 = por %p68, %p69
      %s72 = sadd.s32 %s71, 1
      %p75 = scmp.eq.s32.totalorder %s16, 1
      %p76 = scmp.ne.s32.totalorder %s71, %s73
      %p77 = scmp.eq.s32.totalorder %s16, 0
      %p78 = por %p76, %p77
      %p79 = scmp.ne.s32.totalorder %s71, %s73
      %p80 = scmp.eq.s32.totalorder %s21, 1
      %p81 = por %p79, %p80
      %p82 = scmp.ne.s32.totalorder %s73, %s74
      %p83 = scmp.eq.s32.totalorder %s21, 0
      %p84 = por %p82, %p83
      %p85 = scmp.ne.s32.totalorder %s73, %s74
      %p86 = scmp.eq.s32.totalorder %s22, 1
      %p87 = por %p85, %p86
      %p89 = scmp.ne.s32.totalorder %s74, %s88
      %p90 = scmp.eq.s32.totalorder %s22, 0
      %p91 = por %p89, %p90
      %s93 = sadd.s32 %s92, 1
      %p96 = scmp.eq.s32.totalorder %s16, 1
      %p97 = scmp.ne.s32.totalorder %s92, %s94
      %p98 = scmp.eq.s32.totalorder %s16, 0
      %p99 = por %p97, %p98
      %p100 = scmp.ne.s32.totalorder %s92, %s94
      %p101 = scmp.eq.s32.totalorder %s21, 1
      %p102 = por %p100, %p101
      %p103 = scmp.ne.s32.totalorder %s94, %s95
      %p104 = scmp.eq.s32.totalorder %s21, 0
      %p105 = por %p103, %p104
      %p106 = scmp.ne.s32.totalorder %s94, %s95
      %p107 = scmp.eq.s32.totalorder %s22, 1
      %p108 = por %p106, %p107
      %p110 = scmp.ne.s32.totalorder %s95, %s109
      %p111 = scmp.eq.s32.totalorder %s22, 0
      %p112 = por %p110, %p111
      %s114 = sadd.s32 %s113, 1
      %p117 = scmp.eq.s32.totalorder %s16, 1
      %p118 = scmp.ne.s32.totalorder %s113, %s115
      %p119 = scmp.eq.s32.totalorder %s16, 0
      %p120 = por %p118, %p119
      %p121 = scmp.ne.s32.totalorder %s113, %s115
      %p122 = scmp.eq.s32.totalorder %s21, 1
      %p123 = por %p121, %p122
      %p124 = scmp.ne.s32.totalorder %s115, %s116
      %p125 = scmp.eq.s32.totalorder %s21, 0
      %p126 = por %p124, %p125
      %p127 = scmp.ne.s32.totalorder %s115, %s116
      %p128 = scmp.eq.s32.totalorder %s22, 1
      %p129 = por %p127, %p128
      %p131 = scmp.ne.s32.totalorder %s116, %s130
      %p132 = scmp.eq.s32.totalorder %s22, 0
      %p133 = por %p131, %p132
      %s135 = sadd.s32 %s134, 1
      %p138 = scmp.eq.s32.totalorder %s16, 1
      %p139 = scmp.ne.s32.totalorder %s134, %s136
      %p140 = scmp.eq.s32.totalorder %s16, 0
      %p141 = por %p139, %p140
      %p142 = scmp.ne.s32.totalorder %s134, %s136
      %p143 = scmp.eq.s32.totalorder %s21, 1
      %p144 = por %p142, %p143
      %p145 = scmp.ne.s32.totalorder %s136, %s137
      %p146 = scmp.eq.s32.totalorder %s21, 0
      %p147 = por %p145, %p146
      %p148 = scmp.ne.s32.totalorder %s136, %s137
      %p149 = scmp.eq.s32.totalorder %s22, 1
      %p150 = por %p148, %p149
      %p152 = scmp.ne.s32.totalorder %s137, %s151
      %p153 = scmp.eq.s32.totalorder %s22, 0
      %p154 = por %p152, %p153
      %s156 = sadd.s32 %s155, 1
      %p159 = scmp.eq.s32.totalorder %s16, 1
      %p160 = scmp.ne.s32.totalorder %s155, %s157
      %p161 = scmp.eq.s32.totalorder %s16, 0
      %p162 = por %p160, %p161
      %p163 = scmp.ne.s32.totalorder %s155, %s157
      %p164 = scmp.eq.s32.totalorder %s21, 1
      %p165 = por %p163, %p164
      %p166 = scmp.ne.s32.totalorder %s157, %s158
      %p167 = scmp.eq.s32.totalorder %s21, 0
      %p168 = por %p166, %p167
      %p169 = scmp.ne.s32.totalorder %s157, %s158
      %p170 = scmp.eq.s32.totalorder %s22, 1
      %p171 = por %p169, %p170
      %p173 = scmp.ne.s32.totalorder %s158, %s172
      %p174 = scmp.eq.s32.totalorder %s22, 0
      %p175 = por %p173, %p174
      %s176 = ssub.s32 %s16, %s23
      %p177 = scmp.eq.s32.totalorder %s176, 0
      %s179 = sadd.s32 %s178, 1
      %s180 = scalar_select %p177, %s178, %s179
      %p183 = pneg %p177
      %p184 = scmp.eq.s32.totalorder %s16, 1
      %p185 = por %p183, %p184
      %p186 = scmp.ne.s32.totalorder %s178, %s181
      %p187 = scmp.eq.s32.totalorder %s16, 0
      %p188 = por %p186, %p187
      %p189 = scmp.ne.s32.totalorder %s178, %s181
      %p190 = scmp.eq.s32.totalorder %s21, 1
      %p191 = por %p189, %p190
      %p192 = scmp.ne.s32.totalorder %s181, %s182
      %p193 = scmp.eq.s32.totalorder %s21, 0
      %p194 = por %p192, %p193
      %p195 = scmp.ne.s32.totalorder %s181, %s182
      %p196 = scmp.eq.s32.totalorder %s22, 1
      %p197 = por %p195, %p196
      %p199 = scmp.ne.s32.totalorder %s182, %s198
      %p200 = scmp.eq.s32.totalorder %s22, 0
      %p201 = por %p199, %p200
      %p202 = scmp.le.s32.totalorder 1, %s16
      %p203 = scmp.lt.s32.totalorder %s16, 3
      %p204 = pnand %p202, %p203
      %p205 = pneg %p204
      // Predicated region
      $region9: #{tpu_custom_call.1} parent=5 // pred_check
        _
      $region10: #{tpu_custom_call.1} parent=5 // pred_check_branch
        %207 = sbr.rel (%p204) target = $region12
      $region11: #{tpu_custom_call.1} parent=5 // pred_region
        %s208 = ssub.s32 %s16, 1
        // Predicated region
        $region13: #{tpu_custom_call.1} parent=11 // pred_check
          %p209 = pneg %p63
        $region14: #{tpu_custom_call.1} parent=11 // pred_check_branch
          %211 = sbr.rel (%p209) target = $region16
        $region15: #{tpu_custom_call.1} parent=11 // pred_region
          _
        $region16: #{tpu_custom_call.1} parent=11 // pred_fallthru
          _
        // Predicated region
        $region17: #{tpu_custom_call.1} parent=11 // pred_check
          %p212 = pneg %p84
        $region18: #{tpu_custom_call.1} parent=11 // pred_check_branch
          %214 = sbr.rel (%p212) target = $region20
        $region19: #{tpu_custom_call.1} parent=11 // pred_region
          _
        $region20: #{tpu_custom_call.1} parent=11 // pred_fallthru
          _
        // Predicated region
        $region21: #{tpu_custom_call.1} parent=11 // pred_check
          %p215 = pneg %p105
        $region22: #{tpu_custom_call.1} parent=11 // pred_check_branch
          %217 = sbr.rel (%p215) target = $region24
        $region23: #{tpu_custom_call.1} parent=11 // pred_region
          _
        $region24: #{tpu_custom_call.1} parent=11 // pred_fallthru
          _
        // Predicated region
        $region25: #{tpu_custom_call.1} parent=11 // pred_check
          %p218 = pneg %p126
        $region26: #{tpu_custom_call.1} parent=11 // pred_check_branch
          %220 = sbr.rel (%p218) target = $region28
        $region27: #{tpu_custom_call.1} parent=11 // pred_region
          _
        $region28: #{tpu_custom_call.1} parent=11 // pred_fallthru
          _
        // Predicated region
        $region29: #{tpu_custom_call.1} parent=11 // pred_check
          %p221 = pneg %p147
        $region30: #{tpu_custom_call.1} parent=11 // pred_check_branch
          %223 = sbr.rel (%p221) target = $region32
        $region31: #{tpu_custom_call.1} parent=11 // pred_region
          _
        $region32: #{tpu_custom_call.1} parent=11 // pred_fallthru
          _
        // Predicated region
        $region33: #{tpu_custom_call.1} parent=11 // pred_check
          %p224 = pneg %p168
        $region34: #{tpu_custom_call.1} parent=11 // pred_check_branch
          %226 = sbr.rel (%p224) target = $region36
        $region35: #{tpu_custom_call.1} parent=11 // pred_region
          _
        $region36: #{tpu_custom_call.1} parent=11 // pred_fallthru
          _
      $region12: #{tpu_custom_call.1} parent=5 // pred_fallthru
        _
      %p227 = scmp.lt.s32.totalorder %s16, 2
      // Predicated region
      $region37: #{tpu_custom_call.1} parent=5 // pred_check
        %p228 = pneg %p227
      $region38: #{tpu_custom_call.1} parent=5 // pred_check_branch
        %230 = sbr.rel (%p228) target = $region40
      $region39: #{tpu_custom_call.1} parent=5 // pred_region
        // Predicated region
        $region41: #{tpu_custom_call.1} parent=39 // pred_check
          %p231 = pneg %p36
        $region42: #{tpu_custom_call.1} parent=39 // pred_check_branch
          %233 = sbr.rel (%p231) target = $region44
        $region43: #{tpu_custom_call.1} parent=39 // pred_region
          %s234 = smul.u32 16, %s16
          %p235 = scmp.lt.s32.totalorder %s234, 31
          %s236 = scalar_select %p235, %s234, 31
          %s237 = smul.addr %s236, 4
          %s238 = scalar_lea.vmem %s0, %s237
          %s239 = smul.u32 16, %s16
        $region44: #{tpu_custom_call.1} parent=39 // pred_fallthru
          _
      $region40: #{tpu_custom_call.1} parent=5 // pred_fallthru
        _
      %p240 = scmp.le.s32.totalorder 1, %s16
      %p241 = scmp.lt.s32.totalorder %s16, 3
      %p242 = pnand %p240, %p241
      %p243 = pneg %p242
      // Predicated region
      $region45: #{tpu_custom_call.1} parent=5 // pred_check
        _
      $region46: #{tpu_custom_call.1} parent=5 // pred_check_branch
        %245 = sbr.rel (%p242) target = $region48
      $region47: #{tpu_custom_call.1} parent=5 // pred_region
        %s246 = ssub.s32 %s16, 1
        %s247 = smul.u32 16, %s21
        %p248 = scmp.lt.s32.totalorder %s247, 31
        %s249 = scalar_select %p248, %s247, 31
        %s250 = smul.addr %s249, 4
        %s251 = scalar_lea.vmem %s0, %s250
        %p252 = pneg %p42
        %p253 = pneg %p39
        %p254 = pneg %p63
        %p255 = pneg %p60
        %p256 = pneg %p84
        %p257 = pneg %p81
        %p258 = pneg %p105
        %p259 = pneg %p102
        %p260 = pneg %p126
        %p261 = pneg %p123
        %p262 = pneg %p147
        %p263 = pneg %p144
        %p264 = pneg %p168
        %p265 = pneg %p165
        %p266 = pneg %p194
        %p267 = pneg %p191
        %s268 = sand.u32 %s181, 1
        %s269 = scalar_lea.sflag [#allocation3], %s268
        %s270 = sand.u32 %s181, 1
        %s271 = smul.addr %s270, 8
        %s272 = scalar_lea.vmem [#allocation2], %s271
        %s273 = smul.u32 16, %s21
        %p274 = scmp.lt.s32.totalorder %s273, 31
        %s275 = scalar_select %p274, %s273, 31
        %s276 = smul.addr %s275, 4
        %s277 = scalar_lea.vmem %s0, %s276
        %s278 = smul.u32 16, %s21
        %v280 = vld [vmem:[%s277] sm:$0xf]
        %v281 = vld [vmem:[%s277 + $0x4] sm:$0xf]
        %v282 = vld [vmem:[%s277 + $0x8] sm:$0xf]
        %v283 = vld [vmem:[%s277 + $0xc] sm:$0xf]
        %v284 = vld [vmem:[%s277 + $0x10] sm:$0xf]
        %v285 = vld [vmem:[%s277 + $0x14] sm:$0xf]
        %v286 = vld [vmem:[%s277 + $0x18] sm:$0xf]
        %v287 = vld [vmem:[%s277 + $0x1c] sm:$0xf]
        %v288 = vld [vmem:[%s277 + $0x20] sm:$0xf]
        %v289 = vld [vmem:[%s277 + $0x24] sm:$0xf]
        %v290 = vld [vmem:[%s277 + $0x28] sm:$0xf]
        %v291 = vld [vmem:[%s277 + $0x2c] sm:$0xf]
        %v292 = vld [vmem:[%s277 + $0x30] sm:$0xf]
        %v293 = vld [vmem:[%s277 + $0x34] sm:$0xf]
        %v294 = vld [vmem:[%s277 + $0x38] sm:$0xf]
        %v295 = vld [vmem:[%s277 + $0x3c] sm:$0xf]
        %v296 = vld [vmem:[%s1] sm:$0xf]
        %v297 = vld [vmem:[%s1 + $0x4] sm:$0xf]
        %v298 = vld [vmem:[%s1 + $0x8] sm:$0xf]
        %v299 = vld [vmem:[%s1 + $0xc] sm:$0xf]
        %v300 = vld [vmem:[%s1 + $0x10] sm:$0xf]
        %v301 = vld [vmem:[%s1 + $0x14] sm:$0xf]
        %v302 = vld [vmem:[%s2] sm:$0x1]
        %v304 = vperm.slane %v302, 0
        %v322 = vunpack.c.l.b16 %v280
        %v323 = vunpack.c.l.b16 %v281
        %v324 = vunpack.c.l.b16 %v282
        %v325 = vunpack.c.l.b16 %v283
        %v326 = vunpack.c.l.b16 %v284
        %v327 = vunpack.c.l.b16 %v285
        %v328 = vunpack.c.l.b16 %v286
        %v329 = vunpack.c.l.b16 %v287
        %v330 = vunpack.c.l.b16 %v288
        %v331 = vunpack.c.l.b16 %v289
        %v332 = vunpack.c.l.b16 %v290
        %v333 = vunpack.c.l.b16 %v291
        %v334 = vunpack.c.l.b16 %v292
        %v335 = vunpack.c.l.b16 %v293
        %v336 = vunpack.c.l.b16 %v294
        %v337 = vunpack.c.l.b16 %v295
        %v338 = vpack.c.b16 %v323, %v322
        %v339 = vpack.c.b16 %v325, %v324
        %v340 = vpack.c.b16 %v327, %v326
        %v341 = vpack.c.b16 %v329, %v328
        %v342 = vpack.c.b16 %v331, %v330
        %v343 = vpack.c.b16 %v333, %v332
        %v344 = vpack.c.b16 %v335, %v334
        %v345 = vpack.c.b16 %v337, %v336
        %v352 = vunpack.c.l.b16 %v296
        %v353 = vunpack.c.l.b16 %v297
        %v354 = vunpack.c.l.b16 %v298
        %v355 = vunpack.c.l.b16 %v299
        %v356 = vunpack.c.l.b16 %v300
        %v357 = vunpack.c.l.b16 %v301
        %v358 = vpack.c.b16 %v353, %v352
        %v359 = vpack.c.b16 %v355, %v354
        %v360 = vpack.c.b16 %v357, %v356
        %vm364 = vcmask 392192
        %v366 = vsel %vm364, %v338, 0
        %v369 = vsel %vm364, %v339, 0
        %v372 = vsel %vm364, %v340, 0
        %v375 = vsel %vm364, %v341, 0
        %v378 = vsel %vm364, %v342, 0
        %v381 = vsel %vm364, %v343, 0
        %v384 = vsel %vm364, %v344, 0
        %v387 = vsel %vm364, %v345, 0
        %389 = vmatpush.bf16.msra.mxu0 0
        %390 = vmatpush.bf16.msra.mxu0 0
        %391 = vmatpush.bf16.msra.mxu0 0
        %392 = vmatpush.bf16.msra.mxu0 0
        %393 = vmatpush.bf16.msra.mxu0 0
        %394 = vmatpush.bf16.msra.mxu0 %v360
        %395 = vmatpush.bf16.msra.mxu0 %v359
        %396 = vmatpush.bf16.msra.mxu0 %v358
        %397 = vmatmul.bf16.gmra.mxu0 %v366
        %v398 = vpop.f32.mrf.mxu0
        %v399 = vadd.f32 %v304, %v398
        %v400 = vpop.f32.mrf.mxu0
        %v401 = vadd.f32 %v304, %v400
        %402 = vmatmul.bf16.gmra.mxu0 %v369
        %v403 = vpop.f32.mrf.mxu0
        %v404 = vadd.f32 %v304, %v403
        %v405 = vpop.f32.mrf.mxu0
        %v406 = vadd.f32 %v304, %v405
        %407 = vmatmul.bf16.gmra.mxu0 %v372
        %v408 = vpop.f32.mrf.mxu0
        %v409 = vadd.f32 %v304, %v408
        %v410 = vpop.f32.mrf.mxu0
        %v411 = vadd.f32 %v304, %v410
        %412 = vmatmul.bf16.gmra.mxu0 %v375
        %v413 = vpop.f32.mrf.mxu0
        %v414 = vadd.f32 %v304, %v413
        %v415 = vpop.f32.mrf.mxu0
        %v416 = vadd.f32 %v304, %v415
        %417 = vmatmul.bf16.gmra.mxu0 %v378
        %v418 = vpop.f32.mrf.mxu0
        %v419 = vadd.f32 %v304, %v418
        %v420 = vpop.f32.mrf.mxu0
        %v421 = vadd.f32 %v304, %v420
        %422 = vmatmul.bf16.gmra.mxu0 %v381
        %v423 = vpop.f32.mrf.mxu0
        %v424 = vadd.f32 %v304, %v423
        %v425 = vpop.f32.mrf.mxu0
        %v426 = vadd.f32 %v304, %v425
        %427 = vmatmul.bf16.gmra.mxu0 %v384
        %v428 = vpop.f32.mrf.mxu0
        %v429 = vadd.f32 %v304, %v428
        %v430 = vpop.f32.mrf.mxu0
        %v431 = vadd.f32 %v304, %v430
        %432 = vmatmul.bf16.gmra.mxu0 %v387
        %v433 = vpop.f32.mrf.mxu0
        %v434 = vadd.f32 %v304, %v433
        %v435 = vpop.f32.mrf.mxu0
        %v436 = vadd.f32 %v304, %v435
        %437 = vdwg.mxu0
        %438 = vadd.xlane.f32.xlu0 %v399
        %v439 = vpop.xlane.xlu0 %438
        %440 = vadd.xlane.f32.xlu0 %v401
        %v441 = vpop.xlane.xlu0 %440
        %442 = vadd.xlane.f32.xlu0 %v404
        %v443 = vpop.xlane.xlu0 %442
        %444 = vadd.xlane.f32.xlu0 %v406
        %v445 = vpop.xlane.xlu0 %444
        %446 = vadd.xlane.f32.xlu0 %v409
        %v447 = vpop.xlane.xlu0 %446
        %448 = vadd.xlane.f32.xlu0 %v411
        %v449 = vpop.xlane.xlu0 %448
        %450 = vadd.xlane.f32.xlu0 %v414
        %v451 = vpop.xlane.xlu0 %450
        %452 = vadd.xlane.f32.xlu0 %v416
        %v453 = vpop.xlane.xlu0 %452
        %454 = vadd.xlane.f32.xlu0 %v419
        %v455 = vpop.xlane.xlu0 %454
        %456 = vadd.xlane.f32.xlu0 %v421
        %v457 = vpop.xlane.xlu0 %456
        %458 = vadd.xlane.f32.xlu0 %v424
        %v459 = vpop.xlane.xlu0 %458
        %460 = vadd.xlane.f32.xlu0 %v426
        %v461 = vpop.xlane.xlu0 %460
        %462 = vadd.xlane.f32.xlu0 %v429
        %v463 = vpop.xlane.xlu0 %462
        %464 = vadd.xlane.f32.xlu0 %v431
        %v465 = vpop.xlane.xlu0 %464
        %466 = vadd.xlane.f32.xlu0 %v434
        %v467 = vpop.xlane.xlu0 %466
        %468 = vadd.xlane.f32.xlu0 %v436
        %v469 = vpop.xlane.xlu0 %468
        %v470 = vmul.f32 %v439, 0.03125
        %v471 = vmul.f32 %v441, 0.03125
        %v472 = vmul.f32 %v443, 0.03125
        %v473 = vmul.f32 %v445, 0.03125
        %v474 = vmul.f32 %v447, 0.03125
        %v475 = vmul.f32 %v449, 0.03125
        %v476 = vmul.f32 %v451, 0.03125
        %v477 = vmul.f32 %v453, 0.03125
        %v478 = vmul.f32 %v455, 0.03125
        %v479 = vmul.f32 %v457, 0.03125
        %v480 = vmul.f32 %v459, 0.03125
        %v481 = vmul.f32 %v461, 0.03125
        %v482 = vmul.f32 %v463, 0.03125
        %v483 = vmul.f32 %v465, 0.03125
        %v484 = vmul.f32 %v467, 0.03125
        %v485 = vmul.f32 %v469, 0.03125
        %v486 = vmul.f32 %v399, %v399
        %v487 = vmul.f32 %v401, %v401
        %v488 = vmul.f32 %v404, %v404
        %v489 = vmul.f32 %v406, %v406
        %v490 = vmul.f32 %v409, %v409
        %v491 = vmul.f32 %v411, %v411
        %v492 = vmul.f32 %v414, %v414
        %v493 = vmul.f32 %v416, %v416
        %v494 = vmul.f32 %v419, %v419
        %v495 = vmul.f32 %v421, %v421
        %v496 = vmul.f32 %v424, %v424
        %v497 = vmul.f32 %v426, %v426
        %v498 = vmul.f32 %v429, %v429
        %v499 = vmul.f32 %v431, %v431
        %v500 = vmul.f32 %v434, %v434
        %v501 = vmul.f32 %v436, %v436
        %502 = vadd.xlane.f32.xlu0 %v486
        %v503 = vpop.xlane.xlu0 %502
        %504 = vadd.xlane.f32.xlu0 %v487
        %v505 = vpop.xlane.xlu0 %504
        %506 = vadd.xlane.f32.xlu0 %v488
        %v507 = vpop.xlane.xlu0 %506
        %508 = vadd.xlane.f32.xlu0 %v489
        %v509 = vpop.xlane.xlu0 %508
        %510 = vadd.xlane.f32.xlu0 %v490
        %v511 = vpop.xlane.xlu0 %510
        %512 = vadd.xlane.f32.xlu0 %v491
        %v513 = vpop.xlane.xlu0 %512
        %514 = vadd.xlane.f32.xlu0 %v492
        %v515 = vpop.xlane.xlu0 %514
        %516 = vadd.xlane.f32.xlu0 %v493
        %v517 = vpop.xlane.xlu0 %516
        %518 = vadd.xlane.f32.xlu0 %v494
        %v519 = vpop.xlane.xlu0 %518
        %520 = vadd.xlane.f32.xlu0 %v495
        %v521 = vpop.xlane.xlu0 %520
        %522 = vadd.xlane.f32.xlu0 %v496
        %v523 = vpop.xlane.xlu0 %522
        %524 = vadd.xlane.f32.xlu0 %v497
        %v525 = vpop.xlane.xlu0 %524
        %526 = vadd.xlane.f32.xlu0 %v498
        %v527 = vpop.xlane.xlu0 %526
        %528 = vadd.xlane.f32.xlu0 %v499
        %v529 = vpop.xlane.xlu0 %528
        %530 = vadd.xlane.f32.xlu0 %v500
        %v531 = vpop.xlane.xlu0 %530
        %532 = vadd.xlane.f32.xlu0 %v501
        %v533 = vpop.xlane.xlu0 %532
        %v534 = vmul.f32 %v503, 0.03125
        %v535 = vmul.f32 %v505, 0.03125
        %v536 = vmul.f32 %v507, 0.03125
        %v537 = vmul.f32 %v509, 0.03125
        %v538 = vmul.f32 %v511, 0.03125
        %v539 = vmul.f32 %v513, 0.03125
        %v540 = vmul.f32 %v515, 0.03125
        %v541 = vmul.f32 %v517, 0.03125
        %v542 = vmul.f32 %v519, 0.03125
        %v543 = vmul.f32 %v521, 0.03125
        %v544 = vmul.f32 %v523, 0.03125
        %v545 = vmul.f32 %v525, 0.03125
        %v546 = vmul.f32 %v527, 0.03125
        %v547 = vmul.f32 %v529, 0.03125
        %v548 = vmul.f32 %v531, 0.03125
        %v549 = vmul.f32 %v533, 0.03125
        %v550 = vmul.f32 %v470, %v470
        %v551 = vmul.f32 %v471, %v471
        %v552 = vmul.f32 %v472, %v472
        %v553 = vmul.f32 %v473, %v473
        %v554 = vmul.f32 %v474, %v474
        %v555 = vmul.f32 %v475, %v475
        %v556 = vmul.f32 %v476, %v476
        %v557 = vmul.f32 %v477, %v477
        %v558 = vmul.f32 %v478, %v478
        %v559 = vmul.f32 %v479, %v479
        %v560 = vmul.f32 %v480, %v480
        %v561 = vmul.f32 %v481, %v481
        %v562 = vmul.f32 %v482, %v482
        %v563 = vmul.f32 %v483, %v483
        %v564 = vmul.f32 %v484, %v484
        %v565 = vmul.f32 %v485, %v485
        %v566 = vsub.f32 %v534, %v550
        %v567 = vsub.f32 %v535, %v551
        %v568 = vsub.f32 %v536, %v552
        %v569 = vsub.f32 %v537, %v553
        %v570 = vsub.f32 %v538, %v554
        %v571 = vsub.f32 %v539, %v555
        %v572 = vsub.f32 %v540, %v556
        %v573 = vsub.f32 %v541, %v557
        %v574 = vsub.f32 %v542, %v558
        %v575 = vsub.f32 %v543, %v559
        %v576 = vsub.f32 %v544, %v560
        %v577 = vsub.f32 %v545, %v561
        %v578 = vsub.f32 %v546, %v562
        %v579 = vsub.f32 %v547, %v563
        %v580 = vsub.f32 %v548, %v564
        %v581 = vsub.f32 %v549, %v565
        %v582 = vsub.f32 %v399, %v470
        %v583 = vsub.f32 %v401, %v471
        %v584 = vsub.f32 %v404, %v472
        %v585 = vsub.f32 %v406, %v473
        %v586 = vsub.f32 %v409, %v474
        %v587 = vsub.f32 %v411, %v475
        %v588 = vsub.f32 %v414, %v476
        %v589 = vsub.f32 %v416, %v477
        %v590 = vsub.f32 %v419, %v478
        %v591 = vsub.f32 %v421, %v479
        %v592 = vsub.f32 %v424, %v480
        %v593 = vsub.f32 %v426, %v481
        %v594 = vsub.f32 %v429, %v482
        %v595 = vsub.f32 %v431, %v483
        %v596 = vsub.f32 %v434, %v484
        %v597 = vsub.f32 %v436, %v485
        %v598 = vadd.f32 %v566, 1e-05
        %v599 = vadd.f32 %v567, 1e-05
        %v600 = vadd.f32 %v568, 1e-05
        %v601 = vadd.f32 %v569, 1e-05
        %v602 = vadd.f32 %v570, 1e-05
        %v603 = vadd.f32 %v571, 1e-05
        %v604 = vadd.f32 %v572, 1e-05
        %v605 = vadd.f32 %v573, 1e-05
        %v606 = vadd.f32 %v574, 1e-05
        %v607 = vadd.f32 %v575, 1e-05
        %v608 = vadd.f32 %v576, 1e-05
        %v609 = vadd.f32 %v577, 1e-05
        %v610 = vadd.f32 %v578, 1e-05
        %v611 = vadd.f32 %v579, 1e-05
        %v612 = vadd.f32 %v580, 1e-05
        %v613 = vadd.f32 %v581, 1e-05
        %v614 = vrsqrt.pop %v598
        %v615 = vmul.f32 %v614, %v598
        %v616 = vmul.f32 %v615, %v614
        %v617 = vmul.f32 0.5, %v616
        %v618 = vsub.f32 1.5, %v617
        %v619 = vmul.f32 %v614, %v618
        %vm620 = vweird.f32 %v598
        %vm621 = vweird.f32 %v614
        %vm622 = vmor %vm620, %vm621
        %v623 = vsel %vm622, %v614, %v619
        %v624 = vrsqrt.pop %v599
        %v625 = vmul.f32 %v624, %v599
        %v626 = vmul.f32 %v625, %v624
        %v627 = vmul.f32 0.5, %v626
        %v628 = vsub.f32 1.5, %v627
        %v629 = vmul.f32 %v624, %v628
        %vm630 = vweird.f32 %v599
        %vm631 = vweird.f32 %v624
        %vm632 = vmor %vm630, %vm631
        %v633 = vsel %vm632, %v624, %v629
        %v634 = vrsqrt.pop %v600
        %v635 = vmul.f32 %v634, %v600
        %v636 = vmul.f32 %v635, %v634
        %v637 = vmul.f32 0.5, %v636
        %v638 = vsub.f32 1.5, %v637
        %v639 = vmul.f32 %v634, %v638
        %vm640 = vweird.f32 %v600
        %vm641 = vweird.f32 %v634
        %vm642 = vmor %vm640, %vm641
        %v643 = vsel %vm642, %v634, %v639
        %v644 = vrsqrt.pop %v601
        %v645 = vmul.f32 %v644, %v601
        %v646 = vmul.f32 %v645, %v644
        %v647 = vmul.f32 0.5, %v646
        %v648 = vsub.f32 1.5, %v647
        %v649 = vmul.f32 %v644, %v648
        %vm650 = vweird.f32 %v601
        %vm651 = vweird.f32 %v644
        %vm652 = vmor %vm650, %vm651
        %v653 = vsel %vm652, %v644, %v649
        %v654 = vrsqrt.pop %v602
        %v655 = vmul.f32 %v654, %v602
        %v656 = vmul.f32 %v655, %v654
        %v657 = vmul.f32 0.5, %v656
        %v658 = vsub.f32 1.5, %v657
        %v659 = vmul.f32 %v654, %v658
        %vm660 = vweird.f32 %v602
        %vm661 = vweird.f32 %v654
        %vm662 = vmor %vm660, %vm661
        %v663 = vsel %vm662, %v654, %v659
        %v664 = vrsqrt.pop %v603
        %v665 = vmul.f32 %v664, %v603
        %v666 = vmul.f32 %v665, %v664
        %v667 = vmul.f32 0.5, %v666
        %v668 = vsub.f32 1.5, %v667
        %v669 = vmul.f32 %v664, %v668
        %vm670 = vweird.f32 %v603
        %vm671 = vweird.f32 %v664
        %vm672 = vmor %vm670, %vm671
        %v673 = vsel %vm672, %v664, %v669
        %v674 = vrsqrt.pop %v604
        %v675 = vmul.f32 %v674, %v604
        %v676 = vmul.f32 %v675, %v674
        %v677 = vmul.f32 0.5, %v676
        %v678 = vsub.f32 1.5, %v677
        %v679 = vmul.f32 %v674, %v678
        %vm680 = vweird.f32 %v604
        %vm681 = vweird.f32 %v674
        %vm682 = vmor %vm680, %vm681
        %v683 = vsel %vm682, %v674, %v679
        %v684 = vrsqrt.pop %v605
        %v685 = vmul.f32 %v684, %v605
        %v686 = vmul.f32 %v685, %v684
        %v687 = vmul.f32 0.5, %v686
        %v688 = vsub.f32 1.5, %v687
        %v689 = vmul.f32 %v684, %v688
        %vm690 = vweird.f32 %v605
        %vm691 = vweird.f32 %v684
        %vm692 = vmor %vm690, %vm691
        %v693 = vsel %vm692, %v684, %v689
        %v694 = vrsqrt.pop %v606
        %v695 = vmul.f32 %v694, %v606
        %v696 = vmul.f32 %v695, %v694
        %v697 = vmul.f32 0.5, %v696
        %v698 = vsub.f32 1.5, %v697
        %v699 = vmul.f32 %v694, %v698
        %vm700 = vweird.f32 %v606
        %vm701 = vweird.f32 %v694
        %vm702 = vmor %vm700, %vm701
        %v703 = vsel %vm702, %v694, %v699
        %v704 = vrsqrt.pop %v607
        %v705 = vmul.f32 %v704, %v607
        %v706 = vmul.f32 %v705, %v704
        %v707 = vmul.f32 0.5, %v706
        %v708 = vsub.f32 1.5, %v707
        %v709 = vmul.f32 %v704, %v708
        %vm710 = vweird.f32 %v607
        %vm711 = vweird.f32 %v704
        %vm712 = vmor %vm710, %vm711
        %v713 = vsel %vm712, %v704, %v709
        %v714 = vrsqrt.pop %v608
        %v715 = vmul.f32 %v714, %v608
        %v716 = vmul.f32 %v715, %v714
        %v717 = vmul.f32 0.5, %v716
        %v718 = vsub.f32 1.5, %v717
        %v719 = vmul.f32 %v714, %v718
        %vm720 = vweird.f32 %v608
        %vm721 = vweird.f32 %v714
        %vm722 = vmor %vm720, %vm721
        %v723 = vsel %vm722, %v714, %v719
        %v724 = vrsqrt.pop %v609
        %v725 = vmul.f32 %v724, %v609
        %v726 = vmul.f32 %v725, %v724
        %v727 = vmul.f32 0.5, %v726
        %v728 = vsub.f32 1.5, %v727
        %v729 = vmul.f32 %v724, %v728
        %vm730 = vweird.f32 %v609
        %vm731 = vweird.f32 %v724
        %vm732 = vmor %vm730, %vm731
        %v733 = vsel %vm732, %v724, %v729
        %v734 = vrsqrt.pop %v610
        %v735 = vmul.f32 %v734, %v610
        %v736 = vmul.f32 %v735, %v734
        %v737 = vmul.f32 0.5, %v736
        %v738 = vsub.f32 1.5, %v737
        %v739 = vmul.f32 %v734, %v738
        %vm740 = vweird.f32 %v610
        %vm741 = vweird.f32 %v734
        %vm742 = vmor %vm740, %vm741
        %v743 = vsel %vm742, %v734, %v739
        %v744 = vrsqrt.pop %v611
        %v745 = vmul.f32 %v744, %v611
        %v746 = vmul.f32 %v745, %v744
        %v747 = vmul.f32 0.5, %v746
        %v748 = vsub.f32 1.5, %v747
        %v749 = vmul.f32 %v744, %v748
        %vm750 = vweird.f32 %v611
        %vm751 = vweird.f32 %v744
        %vm752 = vmor %vm750, %vm751
        %v753 = vsel %vm752, %v744, %v749
        %v754 = vrsqrt.pop %v612
        %v755 = vmul.f32 %v754, %v612
        %v756 = vmul.f32 %v755, %v754
        %v757 = vmul.f32 0.5, %v756
        %v758 = vsub.f32 1.5, %v757
        %v759 = vmul.f32 %v754, %v758
        %vm760 = vweird.f32 %v612
        %vm761 = vweird.f32 %v754
        %vm762 = vmor %vm760, %vm761
        %v763 = vsel %vm762, %v754, %v759
        %v764 = vrsqrt.pop %v613
        %v765 = vmul.f32 %v764, %v613
        %v766 = vmul.f32 %v765, %v764
        %v767 = vmul.f32 0.5, %v766
        %v768 = vsub.f32 1.5, %v767
        %v769 = vmul.f32 %v764, %v768
        %vm770 = vweird.f32 %v613
        %vm771 = vweird.f32 %v764
        %vm772 = vmor %vm770, %vm771
        %v773 = vsel %vm772, %v764, %v769
        %v774 = vmul.f32 %v582, %v623
        %v775 = vmul.f32 %v583, %v633
        %v776 = vmul.f32 %v584, %v643
        %v777 = vmul.f32 %v585, %v653
        %v778 = vmul.f32 %v586, %v663
        %v779 = vmul.f32 %v587, %v673
        %v780 = vmul.f32 %v588, %v683
        %v781 = vmul.f32 %v589, %v693
        %v782 = vmul.f32 %v590, %v703
        %v783 = vmul.f32 %v591, %v713
        %v784 = vmul.f32 %v592, %v723
        %v785 = vmul.f32 %v593, %v733
        %v786 = vmul.f32 %v594, %v743
        %v787 = vmul.f32 %v595, %v753
        %v788 = vmul.f32 %v596, %v763
        %v789 = vmul.f32 %v597, %v773
        %v790 = vld [vmem:[%s3] sm:$0x1]
        %v792 = vperm.slane %v790, 0
        %v794 = vmul.f32 %v774, %v792
        %v795 = vmul.f32 %v775, %v792
        %v796 = vmul.f32 %v776, %v792
        %v797 = vmul.f32 %v777, %v792
        %v798 = vmul.f32 %v778, %v792
        %v799 = vmul.f32 %v779, %v792
        %v800 = vmul.f32 %v780, %v792
        %v801 = vmul.f32 %v781, %v792
        %v802 = vmul.f32 %v782, %v792
        %v803 = vmul.f32 %v783, %v792
        %v804 = vmul.f32 %v784, %v792
        %v805 = vmul.f32 %v785, %v792
        %v806 = vmul.f32 %v786, %v792
        %v807 = vmul.f32 %v787, %v792
        %v808 = vmul.f32 %v788, %v792
        %v809 = vmul.f32 %v789, %v792
        %v810 = vld [vmem:[%s4] sm:$0x1]
        %v812 = vperm.slane %v810, 0
        %v814 = vadd.f32 %v794, %v812
        %v815 = vadd.f32 %v795, %v812
        %v816 = vadd.f32 %v796, %v812
        %v817 = vadd.f32 %v797, %v812
        %v818 = vadd.f32 %v798, %v812
        %v819 = vadd.f32 %v799, %v812
        %v820 = vadd.f32 %v800, %v812
        %v821 = vadd.f32 %v801, %v812
        %v822 = vadd.f32 %v802, %v812
        %v823 = vadd.f32 %v803, %v812
        %v824 = vadd.f32 %v804, %v812
        %v825 = vadd.f32 %v805, %v812
        %v826 = vadd.f32 %v806, %v812
        %v827 = vadd.f32 %v807, %v812
        %v828 = vadd.f32 %v808, %v812
        %v829 = vadd.f32 %v809, %v812
        %v830 = vadd.f32 %v814, %v815
        %v831 = vrot.slane %v830, 4
        %v832 = vadd.f32 %v830, %v831
        %v833 = vrot.slane %v832, 2
        %v834 = vadd.f32 %v832, %v833
        %v835 = vrot.slane %v834, 1
        %v836 = vadd.f32 %v834, %v835
        %v837 = vadd.f32 %v816, %v817
        %v838 = vrot.slane %v837, 4
        %v839 = vadd.f32 %v837, %v838
        %v840 = vrot.slane %v839, 2
        %v841 = vadd.f32 %v839, %v840
        %v842 = vrot.slane %v841, 1
        %v843 = vadd.f32 %v841, %v842
        %v844 = vadd.f32 %v818, %v819
        %v845 = vrot.slane %v844, 4
        %v846 = vadd.f32 %v844, %v845
        %v847 = vrot.slane %v846, 2
        %v848 = vadd.f32 %v846, %v847
        %v849 = vrot.slane %v848, 1
        %v850 = vadd.f32 %v848, %v849
        %v851 = vadd.f32 %v820, %v821
        %v852 = vrot.slane %v851, 4
        %v853 = vadd.f32 %v851, %v852
        %v854 = vrot.slane %v853, 2
        %v855 = vadd.f32 %v853, %v854
        %v856 = vrot.slane %v855, 1
        %v857 = vadd.f32 %v855, %v856
        %v858 = vadd.f32 %v822, %v823
        %v859 = vrot.slane %v858, 4
        %v860 = vadd.f32 %v858, %v859
        %v861 = vrot.slane %v860, 2
        %v862 = vadd.f32 %v860, %v861
        %v863 = vrot.slane %v862, 1
        %v864 = vadd.f32 %v862, %v863
        %v865 = vadd.f32 %v824, %v825
        %v866 = vrot.slane %v865, 4
        %v867 = vadd.f32 %v865, %v866
        %v868 = vrot.slane %v867, 2
        %v869 = vadd.f32 %v867, %v868
        %v870 = vrot.slane %v869, 1
        %v871 = vadd.f32 %v869, %v870
        %v872 = vadd.f32 %v826, %v827
        %v873 = vrot.slane %v872, 4
        %v874 = vadd.f32 %v872, %v873
        %v875 = vrot.slane %v874, 2
        %v876 = vadd.f32 %v874, %v875
        %v877 = vrot.slane %v876, 1
        %v878 = vadd.f32 %v876, %v877
        %v879 = vadd.f32 %v828, %v829
        %v880 = vrot.slane %v879, 4
        %v881 = vadd.f32 %v879, %v880
        %v882 = vrot.slane %v881, 2
        %v883 = vadd.f32 %v881, %v882
        %v884 = vrot.slane %v883, 1
        %v885 = vadd.f32 %v883, %v884
        %v886 = vmul.f32 %v836, 0.0625
        %v887 = vmul.f32 %v843, 0.0625
        %v888 = vmul.f32 %v850, 0.0625
        %v889 = vmul.f32 %v857, 0.0625
        %v890 = vmul.f32 %v864, 0.0625
        %v891 = vmul.f32 %v871, 0.0625
        %v892 = vmul.f32 %v878, 0.0625
        %v893 = vmul.f32 %v885, 0.0625
        %v894 = vpack.c.bf16 %v886, %v886
        %v895 = vpack.c.bf16 %v887, %v887
        %v896 = vpack.c.bf16 %v888, %v888
        %v897 = vpack.c.bf16 %v889, %v889
        %v898 = vpack.c.bf16 %v890, %v890
        %v899 = vpack.c.bf16 %v891, %v891
        %v900 = vpack.c.bf16 %v892, %v892
        %v901 = vpack.c.bf16 %v893, %v893
        %v902 = vld [vmem:[%s5] sm:$0xf]
        %v903 = vld [vmem:[%s5 + $0x4] sm:$0xf]
        %v904 = vld [vmem:[%s5 + $0x8] sm:$0xf]
        %v905 = vld [vmem:[%s5 + $0xc] sm:$0xf]
        %v906 = vld [vmem:[%s5 + $0x10] sm:$0xf]
        %v907 = vld [vmem:[%s5 + $0x14] sm:$0xf]
        %v908 = vld [vmem:[%s5 + $0x18] sm:$0xf]
        %v909 = vld [vmem:[%s5 + $0x1c] sm:$0xf]
        %v910 = vld [vmem:[%s5 + $0x20] sm:$0xf]
        %v911 = vld [vmem:[%s5 + $0x24] sm:$0xf]
        %v912 = vld [vmem:[%s5 + $0x28] sm:$0xf]
        %v913 = vld [vmem:[%s5 + $0x2c] sm:$0xf]
        %v914 = vld [vmem:[%s5 + $0x30] sm:$0xf]
        %v915 = vld [vmem:[%s5 + $0x34] sm:$0xf]
        %v916 = vld [vmem:[%s5 + $0x38] sm:$0xf]
        %v917 = vld [vmem:[%s5 + $0x3c] sm:$0xf]
        %v918 = vld [vmem:[%s6] sm:$0x1]
        %v920 = vperm.slane %v918, 0
        %v930 = vunpack.c.l.b16 %v894
        %v931 = vunpack.c.l.b16 %v895
        %v932 = vunpack.c.l.b16 %v896
        %v933 = vunpack.c.l.b16 %v897
        %v934 = vunpack.c.l.b16 %v898
        %v935 = vunpack.c.l.b16 %v899
        %v936 = vunpack.c.l.b16 %v900
        %v937 = vunpack.c.l.b16 %v901
        %vm938 = vcmask 1041409
        %v939 = vsel %vm938, %v931, %v930
        %vm940 = vcmask 1042434
        %v941 = vsel %vm940, %v932, %v939
        %vm942 = vcmask 1043459
        %v943 = vsel %vm942, %v933, %v941
        %vm944 = vcmask 1044484
        %v945 = vsel %vm944, %v934, %v943
        %vm946 = vcmask 1045509
        %v947 = vsel %vm946, %v935, %v945
        %vm948 = vcmask 1046534
        %v949 = vsel %vm948, %v936, %v947
        %vm950 = vcmask 1047559
        %v951 = vsel %vm950, %v937, %v949
        %v952 = vpack.c.b16 %v951, %v951
        %v970 = vunpack.c.l.b16 %v902
        %v971 = vunpack.c.l.b16 %v903
        %v972 = vunpack.c.l.b16 %v904
        %v973 = vunpack.c.l.b16 %v905
        %v974 = vunpack.c.l.b16 %v906
        %v975 = vunpack.c.l.b16 %v907
        %v976 = vunpack.c.l.b16 %v908
        %v977 = vunpack.c.l.b16 %v909
        %v978 = vunpack.c.l.b16 %v910
        %v979 = vunpack.c.l.b16 %v911
        %v980 = vunpack.c.l.b16 %v912
        %v981 = vunpack.c.l.b16 %v913
        %v982 = vunpack.c.l.b16 %v914
        %v983 = vunpack.c.l.b16 %v915
        %v984 = vunpack.c.l.b16 %v916
        %v985 = vunpack.c.l.b16 %v917
        %v986 = vpack.c.b16 %v971, %v970
        %v987 = vpack.c.b16 %v973, %v972
        %v988 = vpack.c.b16 %v975, %v974
        %v989 = vpack.c.b16 %v977, %v976
        %v990 = vpack.c.b16 %v979, %v978
        %v991 = vpack.c.b16 %v981, %v980
        %v992 = vpack.c.b16 %v983, %v982
        %v993 = vpack.c.b16 %v985, %v984
        %1002 = vmatpush.bf16.msra.mxu0 %v993
        %1003 = vmatpush.bf16.msra.mxu0 %v992
        %1004 = vmatpush.bf16.msra.mxu0 %v991
        %1005 = vmatpush.bf16.msra.mxu0 %v990
        %1006 = vmatpush.bf16.msra.mxu0 %v989
        %1007 = vmatpush.bf16.msra.mxu0 %v988
        %1008 = vmatpush.bf16.msra.mxu0 %v987
        %1009 = vmatpush.bf16.msra.mxu0 %v986
        %1010 = vmatmul.bf16.gmra.mxu0 %v952
        %v1011 = vpop.f32.mrf.mxu0
        %v1012 = vadd.f32 %v920, %v1011
        %v1013 = vpop.f32.mrf.mxu0
        %1014 = vdwg.mxu0
        %v1015 = vmul.f32 %v1012, %v1012
        %1016 = vadd.xlane.f32.xlu0 %v1015
        %v1017 = vpop.xlane.xlu0 %1016
        %v1018 = vmax.f32 %v1017, 1e-24
        %v1019 = vrsqrt.pop %v1018
        %v1020 = vmul.f32 %v1019, %v1018
        %v1021 = vmul.f32 %v1020, %v1019
        %v1022 = vmul.f32 0.5, %v1021
        %v1023 = vsub.f32 1.5, %v1022
        %v1024 = vmul.f32 %v1019, %v1023
        %vm1025 = vweird.f32 %v1018
        %vm1026 = vweird.f32 %v1019
        %vm1027 = vmor %vm1025, %vm1026
        %v1028 = vsel %vm1027, %v1019, %v1024
        %v1029 = vmul.f32 %v1012, %v1028
        %1030 = vst [vmem:[%s272] sm:$0xff] %v1029
        %s1031 = sand.u32 %s181, 1
        %s1032 = scalar_lea.sflag [#allocation3], %s1031
        %s1033 = sand.u32 %s181, 1
        %s1034 = smul.addr %s1033, 8
        %s1035 = scalar_lea.vmem [#allocation2], %s1034
        // Predicated region
        $region49: #{tpu_custom_call.1} parent=47 // pred_check
          %p1036 = pneg %p191
        $region50: #{tpu_custom_call.1} parent=47 // pred_check_branch
          %1038 = sbr.rel (%p1036) target = $region52
        $region51: #{tpu_custom_call.1} parent=47 // pred_region
          %1040 = vsyncadd %s1032, 0
          %s1041 = smul.addr %s21, 8
          %s1042 = scalar_lea.hbm %s7, %s1041
          %s1044 = sshll.u32 %s1035, 4
          %s1045 = int_to_ptr.vmem [resolvable:$true] %s1044
          %s1046 = sshll.u32 %s1042, 4
          %s1047 = int_to_ptr.hbm [resolvable:$true] %s1046
          %1049 = dma.vmem_to_hbm [thread:$0]  %s1045, 128, %s1047, %s1032
        $region52: #{tpu_custom_call.1} parent=47 // pred_fallthru
          _
      $region48: #{tpu_custom_call.1} parent=5 // pred_fallthru
        _
      %p1050 = scmp.le.s32.totalorder 2, %s16
      // Predicated region
      $region53: #{tpu_custom_call.1} parent=5 // pred_check
        %p1051 = pneg %p1050
      $region54: #{tpu_custom_call.1} parent=5 // pred_check_branch
        %1053 = sbr.rel (%p1051) target = $region56
      $region55: #{tpu_custom_call.1} parent=5 // pred_region
        %s1054 = ssub.s32 %s16, 2
        // Predicated region
        $region57: #{tpu_custom_call.1} parent=55 // pred_check
          %p1055 = pneg %p197
        $region58: #{tpu_custom_call.1} parent=55 // pred_check_branch
          %1057 = sbr.rel (%p1055) target = $region60
        $region59: #{tpu_custom_call.1} parent=55 // pred_region
          %s1058 = sand.u32 %s182, 1
          %s1059 = scalar_lea.sflag [#allocation3], %s1058
          %s1060 = sand.u32 %s182, 1
          %s1061 = smul.addr %s1060, 8
          %s1062 = scalar_lea.vmem [#allocation2], %s1061
          %1064 = dma.done %s1059, 128
        $region60: #{tpu_custom_call.1} parent=55 // pred_fallthru
          _
      $region56: #{tpu_custom_call.1} parent=5 // pred_fallthru
        _
    $region6: #{tpu_custom_call.1} parent=1 // loop_footer
      %s20 = sadd.s32 1, %s16
    $region7: #{tpu_custom_call.1} parent=1 // loop_footer_branch
      %15 = sbr.rel target = $region3
    $region8: #{tpu_custom_call.1} parent=1 // loop_exit
      _
    %1065 = vsyncpa [#allocation3], 1
    %s1066 = scalar_lea.sflag [#allocation3], 1
    %1067 = vsyncpa %s1066, 1

</llo_original>
